<compile_context>
chip_gen: v6e
topology: v6e:2x2x1
jax: 0.10.0
libtpu: 0.0.40
codegen_flags: <defaults>
</compile_context>

<pallas_src>
import jax
import jax.numpy as jnp
from jax.experimental import pallas as pl
from jax.experimental.pallas import tpu as pltpu


def smallnn_kernel(p_ref, x_ref, o_ref):
    # p_ref: SMEM (9,) f32 = [W1[0,0], W1[0,1], W1[1,0], W1[1,1],
    #                          b1[0],   b1[1],
    #                          W2[0,0], W2[0,1], b2[0]]
    # x_ref: VMEM (2, TILE_B)   o_ref: VMEM (1, TILE_B)
    x0 = x_ref[0:1, :]          # (1, TILE_B) lane-dense feature-0 slab
    x1 = x_ref[1:2, :]          # (1, TILE_B) lane-dense feature-1 slab

    w00 = p_ref[0]
    w01 = p_ref[1]
    w10 = p_ref[2]
    w11 = p_ref[3]
    b0 = p_ref[4]
    b1 = p_ref[5]
    v0 = p_ref[6]
    v1 = p_ref[7]
    b2 = p_ref[8]

    # hidden = leaky_relu(x @ W1.T + b1)  -- explicit VPU FMAs (no MXU)
    h0 = x0 * w00 + x1 * w01 + b0
    h1 = x0 * w10 + x1 * w11 + b1
    # PyTorch default negative_slope = 0.01
    h0 = jnp.where(h0 >= 0, h0, 0.01 * h0)
    h1 = jnp.where(h1 >= 0, h1, 0.01 * h1)

    # out = sigmoid(h @ W2.T + b2)  -- sigmoid runs on the EUP (free slot)
    z = h0 * v0 + h1 * v1 + b2
    o_ref[...] = jax.nn.sigmoid(z).astype(o_ref.dtype)


def smallnn_forward(x, w1, b1, w2, b2, *, tile_b=512):
    """x: (B, 2) f32. w1: (2, 2) [out, in]. b1: (2,). w2: (1, 2). b2: (1,).

    Returns (B, 1) f32, identical semantics to the PyTorch SmallNN.forward.
    """
    B = x.shape[0]
    num_tiles = pl.cdiv(B, tile_b)
    B_pad = num_tiles * tile_b

    # Batch on lanes: (B, 2) -> (2, B), pad batch to a multiple of TILE_B.
    x_t = jnp.transpose(x).astype(jnp.float32)          # (2, B)
    if B_pad != B:
        x_t = jnp.pad(x_t, ((0, 0), (0, B_pad - B)))     # (2, B_pad)

    # All 9 parameters flattened into one SMEM scalar array.
    params = jnp.concatenate(
        [w1.reshape(-1), b1.reshape(-1), w2.reshape(-1), b2.reshape(-1)]
    ).astype(jnp.float32)                                # (9,)

    out = pl.pallas_call(
        smallnn_kernel,
        out_shape=jax.ShapeDtypeStruct((1, B_pad), jnp.float32),
        grid_spec=pltpu.PrefetchScalarGridSpec(
            num_scalar_prefetch=0,
            grid=(num_tiles,),
            in_specs=[
                pl.BlockSpec(memory_space=pltpu.MemorySpace.SMEM),   # params
                pl.BlockSpec((2, tile_b), lambda i: (0, i)),          # x tile
            ],
            out_specs=pl.BlockSpec((1, tile_b), lambda i: (0, i)),
        ),
        compiler_params=pltpu.CompilerParams(
            dimension_semantics=("parallel",),
        ),
        cost_estimate=pl.CostEstimate(
            flops=10 * B_pad,            # 6 FMAs + leaky-relu selects per row
            transcendentals=B_pad,       # one exp per row (sigmoid)
            bytes_accessed=12 * B_pad,   # 8 B in + 4 B out per row
        ),
    )(params, x_t)

    # (1, B_pad) -> (B, 1)
    return jnp.transpose(out[:, :B])


def init_params(key):
    """Deterministic init mirroring SmallNN.init_weights().

    hidden.weight: kaiming_normal_(nonlinearity='leaky_relu')
      -> std = gain / sqrt(fan_in), gain = sqrt(2 / (1 + 0.01^2)), fan_in = 2
    hidden.bias: 0
    output.weight: xavier_normal_ -> std = sqrt(2 / (fan_in + fan_out)) = sqrt(2/3)
    output.bias: 0
    """
    k1, k2 = jax.random.split(key)
    gain_lrelu = jnp.sqrt(2.0 / (1.0 + 0.01 ** 2))
    std_hidden = gain_lrelu / jnp.sqrt(2.0)
    w1 = std_hidden * jax.random.normal(k1, (2, 2), dtype=jnp.float32)  # [out, in]
    b1 = jnp.zeros((2,), dtype=jnp.float32)

    std_out = jnp.sqrt(2.0 / (2.0 + 1.0))
    w2 = std_out * jax.random.normal(k2, (1, 2), dtype=jnp.float32)     # [out, in]
    b2 = jnp.zeros((1,), dtype=jnp.float32)
    return w1, b1, w2, b2


def reference_forward(x, w1, b1, w2, b2):
    h = x @ w1.T + b1
    h = jnp.where(h >= 0, h, 0.01 * h)
    z = h @ w2.T + b2
    return jax.nn.sigmoid(z)


if __name__ == "__main__":
    key = jax.random.PRNGKey(0)
    kx, kp = jax.random.split(key)

    batch = 8
    x = jax.random.normal(kx, (batch, 2), dtype=jnp.float32)
    w1, b1, w2, b2 = init_params(kp)

    out = smallnn_forward(x, w1, b1, w2, b2)
    out = jax.block_until_ready(out)

    ref = reference_forward(x, w1, b1, w2, b2)
    assert out.shape == (batch, 1)
    assert jnp.allclose(out, ref, atol=1e-5, rtol=1e-5)

    print("KERNEL_OK")
</pallas_src>

<mosaic_0001>
module attributes {stable_mosaic.version = 11 : i64} {
  func.func @smallnn_kernel(%arg0: i32, %arg1: memref<9xf32, #tpu.memory_space<smem>>, %arg2: memref<2x512xf32, #tpu.memory_space<vmem>>, %arg3: memref<1x512xf32, #tpu.memory_space<vmem>>) attributes {dimension_semantics = [#tpu.dimension_semantics<parallel>], iteration_bounds = array<i64: 1>, scalar_prefetch = 0 : i64, scratch_operands = 0 : i64, tpu.core_type = #tpu.core_type<tc>, window_params = [{transform_indices = @transform_0, window_bounds = array<i64: 9>}, {transform_indices = @transform_1, window_bounds = array<i64: 2, 512>}, {transform_indices = @transform_2, window_bounds = array<i64: 1, 512>}]} {
    %c0 = arith.constant 0 : index
    %c0_0 = arith.constant 0 : index
    %0 = vector.load %arg2[%c0, %c0_0] : memref<2x512xf32, #tpu.memory_space<vmem>>, vector<1x512xf32>
    %c1 = arith.constant 1 : index
    %c0_1 = arith.constant 0 : index
    %1 = vector.load %arg2[%c1, %c0_1] : memref<2x512xf32, #tpu.memory_space<vmem>>, vector<1x512xf32>
    %c0_2 = arith.constant 0 : index
    %2 = memref.load %arg1[%c0_2] : memref<9xf32, #tpu.memory_space<smem>>
    %c1_3 = arith.constant 1 : index
    %3 = memref.load %arg1[%c1_3] : memref<9xf32, #tpu.memory_space<smem>>
    %c2 = arith.constant 2 : index
    %4 = memref.load %arg1[%c2] : memref<9xf32, #tpu.memory_space<smem>>
    %c3 = arith.constant 3 : index
    %5 = memref.load %arg1[%c3] : memref<9xf32, #tpu.memory_space<smem>>
    %c4 = arith.constant 4 : index
    %6 = memref.load %arg1[%c4] : memref<9xf32, #tpu.memory_space<smem>>
    %c5 = arith.constant 5 : index
    %7 = memref.load %arg1[%c5] : memref<9xf32, #tpu.memory_space<smem>>
    %c6 = arith.constant 6 : index
    %8 = memref.load %arg1[%c6] : memref<9xf32, #tpu.memory_space<smem>>
    %c7 = arith.constant 7 : index
    %9 = memref.load %arg1[%c7] : memref<9xf32, #tpu.memory_space<smem>>
    %c8 = arith.constant 8 : index
    %10 = memref.load %arg1[%c8] : memref<9xf32, #tpu.memory_space<smem>>
    %11 = vector.broadcast %2 : f32 to vector<1x512xf32>
    %12 = arith.mulf %0, %11 : vector<1x512xf32>
    %13 = vector.broadcast %3 : f32 to vector<1x512xf32>
    %14 = arith.mulf %1, %13 : vector<1x512xf32>
    %15 = arith.addf %12, %14 : vector<1x512xf32>
    %16 = vector.broadcast %6 : f32 to vector<1x512xf32>
    %17 = arith.addf %15, %16 : vector<1x512xf32>
    %18 = vector.broadcast %4 : f32 to vector<1x512xf32>
    %19 = arith.mulf %0, %18 : vector<1x512xf32>
    %20 = vector.broadcast %5 : f32 to vector<1x512xf32>
    %21 = arith.mulf %1, %20 : vector<1x512xf32>
    %22 = arith.addf %19, %21 : vector<1x512xf32>
    %23 = vector.broadcast %7 : f32 to vector<1x512xf32>
    %24 = arith.addf %22, %23 : vector<1x512xf32>
    %cst = arith.constant 0.000000e+00 : f32
    %25 = vector.broadcast %cst : f32 to vector<1x512xf32>
    %26 = arith.cmpf oge, %17, %25 : vector<1x512xf32>
    %cst_4 = arith.constant 0.00999999977 : f32
    %27 = vector.broadcast %cst_4 : f32 to vector<1x512xf32>
    %28 = arith.mulf %27, %17 : vector<1x512xf32>
    %29 = arith.select %26, %17, %28 : vector<1x512xi1>, vector<1x512xf32>
    %cst_5 = arith.constant 0.000000e+00 : f32
    %30 = vector.broadcast %cst_5 : f32 to vector<1x512xf32>
    %31 = arith.cmpf oge, %24, %30 : vector<1x512xf32>
    %cst_6 = arith.constant 0.00999999977 : f32
    %32 = vector.broadcast %cst_6 : f32 to vector<1x512xf32>
    %33 = arith.mulf %32, %24 : vector<1x512xf32>
    %34 = arith.select %31, %24, %33 : vector<1x512xi1>, vector<1x512xf32>
    %35 = vector.broadcast %8 : f32 to vector<1x512xf32>
    %36 = arith.mulf %29, %35 : vector<1x512xf32>
    %37 = vector.broadcast %9 : f32 to vector<1x512xf32>
    %38 = arith.mulf %34, %37 : vector<1x512xf32>
    %39 = arith.addf %36, %38 : vector<1x512xf32>
    %40 = vector.broadcast %10 : f32 to vector<1x512xf32>
    %41 = arith.addf %39, %40 : vector<1x512xf32>
    %42 = arith.negf %41 : vector<1x512xf32>
    %43 = math.exp %42 : vector<1x512xf32>
    %cst_7 = arith.constant 1.000000e+00 : f32
    %44 = vector.broadcast %cst_7 : f32 to vector<1x512xf32>
    %45 = arith.addf %44, %43 : vector<1x512xf32>
    %46 = arith.divf %44, %45 : vector<1x512xf32>
    %c0_8 = arith.constant 0 : index
    %c0_9 = arith.constant 0 : index
    %47 = vector.load %arg3[%c0_8, %c0_9] : memref<1x512xf32, #tpu.memory_space<vmem>>, vector<1x512xf32>
    tpu.vector_store %arg3[%c0_8, %c0_9], %46 {strides = array<i32>} : memref<1x512xf32, #tpu.memory_space<vmem>>, vector<1x512xf32>,
    return
  }
  func.func @transform_0(%arg0: i32) -> i32 {
    %c0_i32 = arith.constant 0 : i32
    %c0_i32_0 = arith.constant 0 : i32
    return %c0_i32 : i32
  }
  func.func @transform_1(%arg0: i32) -> (i32, i32) {
    %c0_i32 = arith.constant 0 : i32
    %c0_i32_0 = arith.constant 0 : i32
    return %c0_i32, %arg0 : i32, i32
  }
  func.func @transform_2(%arg0: i32) -> (i32, i32) {
    %c0_i32 = arith.constant 0 : i32
    %c0_i32_0 = arith.constant 0 : i32
    return %c0_i32, %arg0 : i32, i32
  }
}

</mosaic_0001>

<llo_original>
// kernel: tpu_custom_call.1
$region0: #{tpu_custom_call.1}
  #allocation0 [shape = 'u32[]', space=smem, size = 0x4, offset = 0x4, fixed_abs, tag = 'smem constant byte address 0x4 - core index']
  #allocation1 [shape = 'u32[144,128]{1,0:T(1,128)}', space=vmem, size = 0x12000, scoped, tag = 'internal scratch']
  %s0 = inlined_call_operand.hbm [shape: f32[9], index: 0, kind: input, shape index: {}]
  %s1 = inlined_call_operand.hbm [shape: f32[2,512], index: 1, kind: input, shape index: {}]
  %s2 = inlined_call_operand.hbm [shape: f32[1,512], index: 2, kind: output, shape index: {}]
  %s3 = sld [smem:[#allocation0]]
  $region26: #{tpu_custom_call.1} parent=0
    _
  %s5 = ssub.s32 1, %s3
  %s6 = scalar_select 0, %s5, %s3
  $region1: #{tpu_custom_call.1} parent=0
    #allocation2 [shape = 'u8[512]{0}', space=smem, size = 0x200, scoped, tag = 'input window, operand 0, single buffered']
    #allocation3 [shape = 's32[1]{0}', space=sflag, size = 0x4, scoped, tag = 'scoped memory for tpu_custom_call.1']
    #allocation4 [shape = 's32[1]{0}', space=sflag, size = 0x4, scoped, tag = 'scoped memory for tpu_custom_call.1']
    #allocation5 [shape = 's32[1]{0}', space=sflag, size = 0x4, scoped, tag = 'scoped memory for tpu_custom_call.1']
    #allocation6 [shape = 'u8[4096]{0}', space=vmem, size = 0x1000, scoped, tag = 'input window, operand 1, single buffered']
    #allocation7 [shape = 'u8[2048]{0}', space=vmem, size = 0x800, scoped, tag = 'output window, operand 0, single buffered']
    %7 = vsyncpa [#allocation5], 0
    %8 = vsyncpa [#allocation3], 0
    %9 = vsyncpa [#allocation4], 0
    // Predicated region
    $region2: #{tpu_custom_call.1} parent=1 // pred_check
      _
    $region3: #{tpu_custom_call.1} parent=1 // pred_check_branch
      %11 = sbr.rel (0) target = $region5
    $region4: #{tpu_custom_call.1} parent=1 // pred_region
      %s13 = ssub.s32 16, 16
      %14 = vsyncadd [#allocation5], %s13
      %17 = dma.hbm_to_smem %s0, 16, [#allocation2], [#allocation5]
    $region5: #{tpu_custom_call.1} parent=1 // pred_fallthru
      _
    // Predicated region
    $region6: #{tpu_custom_call.1} parent=1 // pred_check
      _
    $region7: #{tpu_custom_call.1} parent=1 // pred_check_branch
      %19 = sbr.rel (0) target = $region9
    $region8: #{tpu_custom_call.1} parent=1 // pred_region
      %s21 = ssub.s32 128, 128
      %22 = vsyncadd [#allocation3], %s21
      %s24 = sshll.u32 [#allocation6], 4
      %s25 = int_to_ptr.vmem [resolvable:$true] %s24
      %27 = dma.hbm_to_vmem [thread:$0]  %s1, 128, %s25, [#allocation3]
    $region9: #{tpu_custom_call.1} parent=1 // pred_fallthru
      _
    // Predicated region
    $region10: #{tpu_custom_call.1} parent=1 // pred_check
      _
    $region11: #{tpu_custom_call.1} parent=1 // pred_check_branch
      %29 = sbr.rel (0) target = $region13
    $region12: #{tpu_custom_call.1} parent=1 // pred_region
      %30 = dma.done [#allocation5], 16
    $region13: #{tpu_custom_call.1} parent=1 // pred_fallthru
      _
    // Predicated region
    $region14: #{tpu_custom_call.1} parent=1 // pred_check
      _
    $region15: #{tpu_custom_call.1} parent=1 // pred_check_branch
      %32 = sbr.rel (0) target = $region17
    $region16: #{tpu_custom_call.1} parent=1 // pred_region
      %33 = dma.done [#allocation3], 128
    $region17: #{tpu_custom_call.1} parent=1 // pred_fallthru
      _
    %34 = sfence
    %v35 = vld [vmem:[#allocation6] ss:$2 sm:$0xf]
    %s36 = scalar_lea.vmem [#allocation6], 1
    %v37 = vld [vmem:[%s36] ss:$2 sm:$0xf]
    %s38 = sld [smem:[#allocation2]]
    %s39 = sld [smem:[#allocation2 + $0x1]]
    %s40 = sld [smem:[#allocation2 + $0x2]]
    %s41 = sld [smem:[#allocation2 + $0x3]]
    %s42 = sld [smem:[#allocation2 + $0x4]]
    %s43 = sld [smem:[#allocation2 + $0x5]]
    %s44 = sld [smem:[#allocation2 + $0x6]]
    %s45 = sld [smem:[#allocation2 + $0x7]]
    %s46 = sld [smem:[#allocation2 + $0x8]]
    %v47 = vstv %s38
    %v48 = vmul.f32 %v35, %v47
    %v49 = vstv %s39
    %v50 = vmul.f32 %v37, %v49
    %v51 = vadd.f32 %v48, %v50
    %v52 = vstv %s42
    %v53 = vadd.f32 %v51, %v52
    %v54 = vstv %s40
    %v55 = vmul.f32 %v35, %v54
    %v56 = vstv %s41
    %v57 = vmul.f32 %v37, %v56
    %v58 = vadd.f32 %v55, %v57
    %v59 = vstv %s43
    %v60 = vadd.f32 %v58, %v59
    %vm61 = vcmp.ge.f32.partialorder %v53, 0.0
    %v62 = vmul.f32 %v53, 0.01
    %v63 = vsel %vm61, %v53, %v62
    %vm64 = vcmp.ge.f32.partialorder %v60, 0.0
    %v65 = vmul.f32 %v60, 0.01
    %v66 = vsel %vm64, %v60, %v65
    %v67 = vstv %s44
    %v68 = vmul.f32 %v63, %v67
    %v69 = vstv %s45
    %v70 = vmul.f32 %v66, %v69
    %v71 = vadd.f32 %v68, %v70
    %v72 = vstv %s46
    %v73 = vadd.f32 %v71, %v72
    %v74 = vxor.u32 %v73, 2147483648
    %v75 = vmul.f32 %v74, 1.442695
    %v76 = vpow.pop %v75
    %v77 = vadd.f32 %v76, 1.0
    %v78 = vrcp.pop %v77
    %v79 = vmul.f32 1.0, %v78
    %v80 = vlaneseq
    %vm81 = vcmp.ge.s32.totalorder %v80, 0
    %vm82 = vcmp.lt.s32.totalorder %v80, 512
    %vm83 = vmand %vm81, %vm82
    %84 = vst.msk [vmem:[#allocation7] sm:$0xf] %vm83, %v79
    // Predicated region
    $region18: #{tpu_custom_call.1} parent=1 // pred_check
      _
    $region19: #{tpu_custom_call.1} parent=1 // pred_check_branch
      %86 = sbr.rel (0) target = $region21
    $region20: #{tpu_custom_call.1} parent=1 // pred_region
      %s88 = ssub.s32 64, 64
      %89 = vsyncadd [#allocation4], %s88
      %s91 = sshll.u32 [#allocation7], 4
      %s92 = int_to_ptr.vmem [resolvable:$true] %s91
      %94 = dma.vmem_to_hbm [thread:$0]  %s92, 64, %s2, [#allocation4]
    $region21: #{tpu_custom_call.1} parent=1 // pred_fallthru
      _
    // Predicated region
    $region22: #{tpu_custom_call.1} parent=1 // pred_check
      _
    $region23: #{tpu_custom_call.1} parent=1 // pred_check_branch
      %96 = sbr.rel (0) target = $region25
    $region24: #{tpu_custom_call.1} parent=1 // pred_region
      %97 = dma.done [#allocation4], 64
    $region25: #{tpu_custom_call.1} parent=1 // pred_fallthru
      _
    %98 = vsyncpa [#allocation3], 1
    %99 = vsyncpa [#allocation4], 1
    %100 = vsyncpa [#allocation5], 1

</llo_original>
